<compile_context>
chip_gen: v7x
topology: tpu7x:2x2x1
jax: 0.10.0
libtpu: 0.0.40
codegen_flags: <defaults>
</compile_context>

<pallas_src>
import jax
import jax.numpy as jnp
from jax import lax
from jax.experimental import pallas as pl
from jax.experimental.pallas import tpu as pltpu

NEG_SLOPE = 0.01  # PyTorch LeakyReLU default
BN_EPS = 1e-5


# ----------------------------------------------------------------------------
# Kernel
# ----------------------------------------------------------------------------
def fused_conv_block_kernel(x_ref, a1_ref, b1_ref, a2_ref, b2_ref, o_ref,
                            xpad_ref, hpad_ref):
    """Nb images per grid step, both conv stages fused.

    x_ref   : (Nb*H,    W*Cin)    bf16  packed input rows (no halo)
    a1_ref  : (W*Cin,   3*W*Cout) bf16  dy-concatenated band matrix, BN1 folded
    b1_ref  : (1,       W*Cout)   f32   packed bias (conv1 + BN1)
    a2_ref  : (W*Cout,  3*W*Cout) bf16  dy-concatenated band matrix, BN2 folded
    b2_ref  : (1,       W*Cout)   f32   packed bias (conv2 + BN2)
    o_ref   : (Nb*H,    W*Cout)   bf16
    xpad_ref: (Nb*(H+2), W*Cin)   bf16  VMEM scratch (per-image zero halos)
    hpad_ref: (Nb*(H+2), W*Cout)  bf16  VMEM scratch (per-image zero halos)
    """
    NbH = x_ref.shape[0]
    Mp = xpad_ref.shape[0]          # Nb * (H + 2)
    WCo = o_ref.shape[1]
    Nb = (Mp - NbH) // 2
    H = NbH // Nb
    Hp2 = H + 2

    def stage(pad_ref, src, src_stride, a_ref, b_ref):
        # Materialize per-image zero top/bottom halo rows in VMEM scratch,
        # then fill the interiors with static row slices (no concatenates).
        pad_ref[...] = jnp.zeros(pad_ref.shape, pad_ref.dtype)
        for n in range(Nb):  # static Python loop, unrolled at trace time
            pad_ref[pl.ds(n * Hp2 + 1, H), :] = (
                src[n * src_stride:n * src_stride + H, :].astype(pad_ref.dtype))
        # One wide MXU push: M = Nb*(H+2), N = 3*W*Cout.
        y = jnp.dot(pad_ref[...], a_ref[...],
                    preferred_element_type=jnp.float32)
        # Shifted three-band sum (128-lane-aligned column slices, VPU adds).
        acc = (y[0:Mp - 2, 0:WCo]
               + y[1:Mp - 1, WCo:2 * WCo]
               + y[2:Mp, 2 * WCo:3 * WCo]
               + b_ref[...])
        return jnp.where(acc >= 0.0, acc, NEG_SLOPE * acc)   # (Mp-2, WCo) f32

    # ---- stage 1: conv1 (+BN1) -> Dropout(0.3)=identity -> LeakyReLU -------
    h = stage(xpad_ref, x_ref[...], H, a1_ref, b1_ref)
    # ---- stage 2: conv2 (+BN2) -> Dropout(0.4)=identity -> LeakyReLU -------
    y = stage(hpad_ref, h, Hp2, a2_ref, b2_ref)

    # Store only the H valid rows per image (skip the 2 inter-image garbage rows).
    for n in range(Nb):
        o_ref[pl.ds(n * H, H), :] = (
            y[n * Hp2:n * Hp2 + H, :].astype(o_ref.dtype))


# ----------------------------------------------------------------------------
# pallas_call wrapper
# ----------------------------------------------------------------------------
def _pick_nb(N, H, WCin, WCout, budget_bytes=24 * 1024 * 1024):
    """Largest divisor of N that fits a conservative VMEM budget, stopping once
    M = Nb*(H+2) is big enough to fill the MXU rows (>=256)."""
    Hp2 = H + 2
    weights = (WCin + WCout) * 3 * WCout * 2 + 2 * WCout * 4
    best = 1
    for nb in range(1, N + 1):
        if N % nb:
            continue
        io = 2 * nb * H * (WCin + WCout) * 2            # double-buffered in/out, bf16
        scratch = nb * Hp2 * (WCin + WCout) * 2         # padded scratches, bf16
        temps = 3 * nb * Hp2 * 3 * WCout * 4            # f32 matmul results (rough)
        if weights + io + scratch + temps > budget_bytes:
            break
        best = nb
        if nb * Hp2 >= 256:
            break
    return best


def _fused_pallas(x_packed, a1, b1, a2, b2, H, Nb):
    NH, WCin = x_packed.shape
    N = NH // H
    WCout = a1.shape[-1] // 3
    Hp2 = H + 2

    flops = 2 * N * Hp2 * 3 * WCout * (WCin + WCout)
    bytes_accessed = (x_packed.size * 2 + a1.size * 2 + a2.size * 2
                      + b1.size * 4 + b2.size * 4 + NH * WCout * 2)

    return pl.pallas_call(
        fused_conv_block_kernel,
        out_shape=jax.ShapeDtypeStruct((NH, WCout), jnp.bfloat16),
        grid=(N // Nb,),
        in_specs=[
            pl.BlockSpec((Nb * H, WCin), lambda i: (i, 0)),
            pl.BlockSpec((WCin, 3 * WCout), lambda i: (0, 0)),
            pl.BlockSpec((1, WCout), lambda i: (0, 0)),
            pl.BlockSpec((WCout, 3 * WCout), lambda i: (0, 0)),
            pl.BlockSpec((1, WCout), lambda i: (0, 0)),
        ],
        out_specs=pl.BlockSpec((Nb * H, WCout), lambda i: (i, 0)),
        scratch_shapes=[
            pltpu.VMEM((Nb * Hp2, WCin), jnp.bfloat16),
            pltpu.VMEM((Nb * Hp2, WCout), jnp.bfloat16),
        ],
        compiler_params=pltpu.CompilerParams(
            dimension_semantics=("parallel",),
            vmem_limit_bytes=32 * 1024 * 1024),
        cost_estimate=pl.CostEstimate(flops=flops, transcendentals=0,
                                      bytes_accessed=bytes_accessed),
    )(x_packed, a1, b1, a2, b2)


# ----------------------------------------------------------------------------
# Host-side parameter preparation (one-time transform)
# ----------------------------------------------------------------------------
def fold_bn(conv_bias, gamma, beta, running_mean, running_var, eps=BN_EPS):
    """y = conv_nobias(x) * scale + bias   (eval-mode BatchNorm folded)."""
    scale = gamma / jnp.sqrt(running_var + eps)
    bias = (conv_bias - running_mean) * scale + beta
    return scale, bias


def build_band_matrices(w_hwio, scale, W):
    """dy-concatenated banded block-Toeplitz matrix [A0 | A1 | A2].

    A_dy[xi*Cin + ci, xo*Cout + co] = scale[co] * w[dy, xi-xo+1, ci, co]
    for dx = xi-xo+1 in {0,1,2}, else 0 (left/right zero padding implicit).
    Returns (W*Cin, 3*W*Cout) float32.
    """
    ws = w_hwio * scale[None, None, None, :]  # fold BN scale along Cout
    mats = []
    for dy in range(3):
        a = jnp.zeros((W * ws.shape[2], W * ws.shape[3]), ws.dtype)
        for dx in range(3):
            a = a + jnp.kron(jnp.eye(W, W, k=1 - dx, dtype=ws.dtype), ws[dy, dx])
        mats.append(a)
    return jnp.concatenate(mats, axis=1)


def prepare_params(params, W):
    s1, b1 = fold_bn(params["b1"], params["g1"], params["be1"],
                     params["m1"], params["v1"])
    s2, b2 = fold_bn(params["b2"], params["g2"], params["be2"],
                     params["m2"], params["v2"])
    return {
        "a1": build_band_matrices(params["w1"], s1, W).astype(jnp.bfloat16),
        "b1": jnp.tile(b1, W).reshape(1, -1).astype(jnp.float32),
        "a2": build_band_matrices(params["w2"], s2, W).astype(jnp.bfloat16),
        "b2": jnp.tile(b2, W).reshape(1, -1).astype(jnp.float32),
    }


# ----------------------------------------------------------------------------
# Forward wrapper (NCHW in / NCHW out, like the PyTorch module)
# ----------------------------------------------------------------------------
@jax.jit
def conv_block_forward(x_nchw, prepped):
    N, Cin, H, W = x_nchw.shape
    WCout = prepped["a1"].shape[-1] // 3
    Cout = WCout // W
    WCin = W * Cin

    # bf16 cast BEFORE the relayout (halves transpose traffic); no host-side pad —
    # halo rows are materialized inside the kernel's VMEM scratch.
    xp = jnp.transpose(x_nchw.astype(jnp.bfloat16), (0, 2, 3, 1)).reshape(N * H, WCin)

    Nb = _pick_nb(N, H, WCin, WCout)
    y = _fused_pallas(xp, prepped["a1"], prepped["b1"],
                      prepped["a2"], prepped["b2"], H, Nb)       # (N*H, W*Cout) bf16

    # Packed bf16 -> NCHW f32 (only because the module's contract is NCHW; chained
    # Conv blocks should keep the packed (N*H, W*C) layout between calls).
    return jnp.transpose(y.reshape(N, H, W, Cout), (0, 3, 1, 2)).astype(jnp.float32)


# ----------------------------------------------------------------------------
# Parameters + pure-JAX reference
# ----------------------------------------------------------------------------
def make_params(key, in_channel, out_channel):
    ks = jax.random.split(key, 8)
    # PyTorch Conv2d weight layout is (Cout, Cin, 3, 3); convert to HWIO.
    w1_oihw = jax.random.normal(ks[0], (out_channel, in_channel, 3, 3), jnp.float32) * 0.1
    w2_oihw = jax.random.normal(ks[1], (out_channel, out_channel, 3, 3), jnp.float32) * 0.1
    return {
        "w1": jnp.transpose(w1_oihw, (2, 3, 1, 0)),
        "b1": jax.random.normal(ks[2], (out_channel,), jnp.float32) * 0.1,
        "g1": 1.0 + 0.1 * jax.random.normal(ks[3], (out_channel,), jnp.float32),
        "be1": 0.1 * jax.random.normal(ks[4], (out_channel,), jnp.float32),
        "m1": jnp.zeros((out_channel,), jnp.float32),
        "v1": jnp.ones((out_channel,), jnp.float32),
        "w2": jnp.transpose(w2_oihw, (2, 3, 1, 0)),
        "b2": jax.random.normal(ks[5], (out_channel,), jnp.float32) * 0.1,
        "g2": 1.0 + 0.1 * jax.random.normal(ks[6], (out_channel,), jnp.float32),
        "be2": 0.1 * jax.random.normal(ks[7], (out_channel,), jnp.float32),
        "m2": jnp.zeros((out_channel,), jnp.float32),
        "v2": jnp.ones((out_channel,), jnp.float32),
    }


def reference_forward(x_nchw, params):
    """Pure-JAX f32 reference (NCHW convs) for correctness check."""
    def stage(x, w_hwio, conv_b, g, be, m, v):
        w_oihw = jnp.transpose(w_hwio, (3, 2, 0, 1))
        y = lax.conv_general_dilated(
            x, w_oihw, window_strides=(1, 1), padding=((1, 1), (1, 1)),
            dimension_numbers=("NCHW", "OIHW", "NCHW"))
        y = y + conv_b[None, :, None, None]
        y = (y - m[None, :, None, None]) / jnp.sqrt(v[None, :, None, None] + BN_EPS)
        y = y * g[None, :, None, None] + be[None, :, None, None]
        return jnp.where(y >= 0.0, y, NEG_SLOPE * y)

    h = stage(x_nchw, params["w1"], params["b1"], params["g1"], params["be1"],
              params["m1"], params["v1"])
    return stage(h, params["w2"], params["b2"], params["g2"], params["be2"],
                 params["m2"], params["v2"])


if __name__ == "__main__":
    key = jax.random.PRNGKey(0)
    k_x, k_p = jax.random.split(key)

    N, Cin, Cout, H, W = 2, 4, 8, 16, 16
    x = jax.random.normal(k_x, (N, Cin, H, W), jnp.float32)   # PyTorch NCHW input
    params = make_params(k_p, Cin, Cout)
    prepped = prepare_params(params, W)

    out = conv_block_forward(x, prepped)
    out = jax.block_until_ready(out)

    ref = reference_forward(x, params)
    assert out.shape == (N, Cout, H, W), out.shape
    # bf16 MXU operands, bf16 inter-stage activation and bf16 output with f32
    # accumulation -> looser tolerance than pure f32.
    max_err = float(jnp.max(jnp.abs(out - ref)))
    assert jnp.allclose(out, ref, atol=3e-2, rtol=3e-2), max_err

    print("KERNEL_OK")
</pallas_src>

<mosaic_0001>
module attributes {stable_mosaic.version = 11 : i64} {
  func.func @fused_conv_block_kernel(%arg0: i32, %arg1: memref<32x64xbf16, #tpu.memory_space<vmem>>, %arg2: memref<64x384xbf16, #tpu.memory_space<vmem>>, %arg3: memref<1x128xf32, #tpu.memory_space<vmem>>, %arg4: memref<128x384xbf16, #tpu.memory_space<vmem>>, %arg5: memref<1x128xf32, #tpu.memory_space<vmem>>, %arg6: memref<32x128xbf16, #tpu.memory_space<vmem>>, %arg7: memref<36x64xbf16, #tpu.memory_space<vmem>>, %arg8: memref<36x128xbf16, #tpu.memory_space<vmem>>) attributes {dimension_semantics = [#tpu.dimension_semantics<parallel>], iteration_bounds = array<i64: 1>, scalar_prefetch = 0 : i64, scratch_operands = 2 : i64, tpu.core_type = #tpu.core_type<tc>, window_params = [{transform_indices = @transform_0, window_bounds = array<i64: 32, 64>}, {pipeline_mode = #tpu.pipeline_mode<synchronous>, transform_indices = @transform_1, window_bounds = array<i64: 64, 384>}, {pipeline_mode = #tpu.pipeline_mode<synchronous>, transform_indices = @transform_2, window_bounds = array<i64: 1, 128>}, {pipeline_mode = #tpu.pipeline_mode<synchronous>, transform_indices = @transform_3, window_bounds = array<i64: 128, 384>}, {pipeline_mode = #tpu.pipeline_mode<synchronous>, transform_indices = @transform_4, window_bounds = array<i64: 1, 128>}, {transform_indices = @transform_5, window_bounds = array<i64: 32, 128>}]} {
    %c0 = arith.constant 0 : index
    %c0_0 = arith.constant 0 : index
    %0 = vector.load %arg1[%c0, %c0_0] : memref<32x64xbf16, #tpu.memory_space<vmem>>, vector<32x64xbf16>
    %cst = arith.constant 0.000000e+00 : bf16
    %1 = vector.broadcast %cst : bf16 to vector<36x64xbf16>
    %c0_1 = arith.constant 0 : index
    %c0_2 = arith.constant 0 : index
    %2 = vector.load %arg7[%c0_1, %c0_2] : memref<36x64xbf16, #tpu.memory_space<vmem>>, vector<36x64xbf16>
    tpu.vector_store %arg7[%c0_1, %c0_2], %1 {strides = array<i32>} : memref<36x64xbf16, #tpu.memory_space<vmem>>, vector<36x64xbf16>,
    %3 = vector.extract_strided_slice %0 {offsets = [0, 0], sizes = [16, 64], strides = [1, 1]} : vector<32x64xbf16> to vector<16x64xbf16>
    %c1 = arith.constant 1 : index
    %c0_3 = arith.constant 0 : index
    %4 = vector.load %arg7[%c1, %c0_3] : memref<36x64xbf16, #tpu.memory_space<vmem>>, vector<16x64xbf16>
    tpu.vector_store %arg7[%c1, %c0_3], %3 {strides = array<i32>} : memref<36x64xbf16, #tpu.memory_space<vmem>>, vector<16x64xbf16>,
    %5 = vector.extract_strided_slice %0 {offsets = [16, 0], sizes = [16, 64], strides = [1, 1]} : vector<32x64xbf16> to vector<16x64xbf16>
    %c19 = arith.constant 19 : index
    %c0_4 = arith.constant 0 : index
    %6 = vector.load %arg7[%c19, %c0_4] : memref<36x64xbf16, #tpu.memory_space<vmem>>, vector<16x64xbf16>
    tpu.vector_store %arg7[%c19, %c0_4], %5 {strides = array<i32>} : memref<36x64xbf16, #tpu.memory_space<vmem>>, vector<16x64xbf16>,
    %c0_5 = arith.constant 0 : index
    %c0_6 = arith.constant 0 : index
    %7 = vector.load %arg7[%c0_5, %c0_6] : memref<36x64xbf16, #tpu.memory_space<vmem>>, vector<36x64xbf16>
    %c0_7 = arith.constant 0 : index
    %c0_8 = arith.constant 0 : index
    %8 = vector.load %arg2[%c0_7, %c0_8] : memref<64x384xbf16, #tpu.memory_space<vmem>>, vector<64x384xbf16>
    %cst_9 = arith.constant dense<0.000000e+00> : vector<36x384xf32>
    %9 = tpu.matmul %7, %8, %cst_9 {dimension_numbers = #tpu.dot_dimension_numbers<[1], [0], [0], [1], [0, 0, 1, 1], [], []>} : vector<36x64xbf16>, vector<64x384xbf16>, vector<36x384xf32> -> vector<36x384xf32>
    %10 = vector.extract_strided_slice %9 {offsets = [0, 0], sizes = [34, 128], strides = [1, 1]} : vector<36x384xf32> to vector<34x128xf32>
    %11 = vector.extract_strided_slice %9 {offsets = [1, 128], sizes = [34, 128], strides = [1, 1]} : vector<36x384xf32> to vector<34x128xf32>
    %12 = arith.addf %10, %11 : vector<34x128xf32>
    %13 = vector.extract_strided_slice %9 {offsets = [2, 256], sizes = [34, 128], strides = [1, 1]} : vector<36x384xf32> to vector<34x128xf32>
    %14 = arith.addf %12, %13 : vector<34x128xf32>
    %c0_10 = arith.constant 0 : index
    %c0_11 = arith.constant 0 : index
    %15 = vector.load %arg3[%c0_10, %c0_11] : memref<1x128xf32, #tpu.memory_space<vmem>>, vector<1x128xf32>
    %16 = vector.broadcast %15 : vector<1x128xf32> to vector<34x128xf32>
    %17 = arith.addf %14, %16 : vector<34x128xf32>
    %cst_12 = arith.constant 0.000000e+00 : f32
    %18 = vector.broadcast %cst_12 : f32 to vector<34x128xf32>
    %19 = arith.cmpf oge, %17, %18 : vector<34x128xf32>
    %cst_13 = arith.constant 0.00999999977 : f32
    %20 = vector.broadcast %cst_13 : f32 to vector<34x128xf32>
    %21 = arith.mulf %20, %17 : vector<34x128xf32>
    %22 = arith.select %19, %17, %21 : vector<34x128xi1>, vector<34x128xf32>
    %cst_14 = arith.constant 0.000000e+00 : bf16
    %23 = vector.broadcast %cst_14 : bf16 to vector<36x128xbf16>
    %c0_15 = arith.constant 0 : index
    %c0_16 = arith.constant 0 : index
    %24 = vector.load %arg8[%c0_15, %c0_16] : memref<36x128xbf16, #tpu.memory_space<vmem>>, vector<36x128xbf16>
    tpu.vector_store %arg8[%c0_15, %c0_16], %23 {strides = array<i32>} : memref<36x128xbf16, #tpu.memory_space<vmem>>, vector<36x128xbf16>,
    %25 = vector.extract_strided_slice %22 {offsets = [0, 0], sizes = [16, 128], strides = [1, 1]} : vector<34x128xf32> to vector<16x128xf32>
    %26 = arith.truncf %25 : vector<16x128xf32> to vector<16x128xbf16>
    %c1_17 = arith.constant 1 : index
    %c0_18 = arith.constant 0 : index
    %27 = vector.load %arg8[%c1_17, %c0_18] : memref<36x128xbf16, #tpu.memory_space<vmem>>, vector<16x128xbf16>
    tpu.vector_store %arg8[%c1_17, %c0_18], %26 {strides = array<i32>} : memref<36x128xbf16, #tpu.memory_space<vmem>>, vector<16x128xbf16>,
    %28 = vector.extract_strided_slice %22 {offsets = [18, 0], sizes = [16, 128], strides = [1, 1]} : vector<34x128xf32> to vector<16x128xf32>
    %29 = arith.truncf %28 : vector<16x128xf32> to vector<16x128xbf16>
    %c19_19 = arith.constant 19 : index
    %c0_20 = arith.constant 0 : index
    %30 = vector.load %arg8[%c19_19, %c0_20] : memref<36x128xbf16, #tpu.memory_space<vmem>>, vector<16x128xbf16>
    tpu.vector_store %arg8[%c19_19, %c0_20], %29 {strides = array<i32>} : memref<36x128xbf16, #tpu.memory_space<vmem>>, vector<16x128xbf16>,
    %c0_21 = arith.constant 0 : index
    %c0_22 = arith.constant 0 : index
    %31 = vector.load %arg8[%c0_21, %c0_22] : memref<36x128xbf16, #tpu.memory_space<vmem>>, vector<36x128xbf16>
    %c0_23 = arith.constant 0 : index
    %c0_24 = arith.constant 0 : index
    %32 = vector.load %arg4[%c0_23, %c0_24] : memref<128x384xbf16, #tpu.memory_space<vmem>>, vector<128x384xbf16>
    %cst_25 = arith.constant dense<0.000000e+00> : vector<36x384xf32>
    %33 = tpu.matmul %31, %32, %cst_25 {dimension_numbers = #tpu.dot_dimension_numbers<[1], [0], [0], [1], [0, 0, 1, 1], [], []>} : vector<36x128xbf16>, vector<128x384xbf16>, vector<36x384xf32> -> vector<36x384xf32>
    %34 = vector.extract_strided_slice %33 {offsets = [0, 0], sizes = [34, 128], strides = [1, 1]} : vector<36x384xf32> to vector<34x128xf32>
    %35 = vector.extract_strided_slice %33 {offsets = [1, 128], sizes = [34, 128], strides = [1, 1]} : vector<36x384xf32> to vector<34x128xf32>
    %36 = arith.addf %34, %35 : vector<34x128xf32>
    %37 = vector.extract_strided_slice %33 {offsets = [2, 256], sizes = [34, 128], strides = [1, 1]} : vector<36x384xf32> to vector<34x128xf32>
    %38 = arith.addf %36, %37 : vector<34x128xf32>
    %c0_26 = arith.constant 0 : index
    %c0_27 = arith.constant 0 : index
    %39 = vector.load %arg5[%c0_26, %c0_27] : memref<1x128xf32, #tpu.memory_space<vmem>>, vector<1x128xf32>
    %40 = vector.broadcast %39 : vector<1x128xf32> to vector<34x128xf32>
    %41 = arith.addf %38, %40 : vector<34x128xf32>
    %cst_28 = arith.constant 0.000000e+00 : f32
    %42 = vector.broadcast %cst_28 : f32 to vector<34x128xf32>
    %43 = arith.cmpf oge, %41, %42 : vector<34x128xf32>
    %cst_29 = arith.constant 0.00999999977 : f32
    %44 = vector.broadcast %cst_29 : f32 to vector<34x128xf32>
    %45 = arith.mulf %44, %41 : vector<34x128xf32>
    %46 = arith.select %43, %41, %45 : vector<34x128xi1>, vector<34x128xf32>
    %47 = vector.extract_strided_slice %46 {offsets = [0, 0], sizes = [16, 128], strides = [1, 1]} : vector<34x128xf32> to vector<16x128xf32>
    %48 = arith.truncf %47 : vector<16x128xf32> to vector<16x128xbf16>
    %c0_30 = arith.constant 0 : index
    %c0_31 = arith.constant 0 : index
    %49 = vector.load %arg6[%c0_30, %c0_31] : memref<32x128xbf16, #tpu.memory_space<vmem>>, vector<16x128xbf16>
    tpu.vector_store %arg6[%c0_30, %c0_31], %48 {strides = array<i32>} : memref<32x128xbf16, #tpu.memory_space<vmem>>, vector<16x128xbf16>,
    %50 = vector.extract_strided_slice %46 {offsets = [18, 0], sizes = [16, 128], strides = [1, 1]} : vector<34x128xf32> to vector<16x128xf32>
    %51 = arith.truncf %50 : vector<16x128xf32> to vector<16x128xbf16>
    %c16 = arith.constant 16 : index
    %c0_32 = arith.constant 0 : index
    %52 = vector.load %arg6[%c16, %c0_32] : memref<32x128xbf16, #tpu.memory_space<vmem>>, vector<16x128xbf16>
    tpu.vector_store %arg6[%c16, %c0_32], %51 {strides = array<i32>} : memref<32x128xbf16, #tpu.memory_space<vmem>>, vector<16x128xbf16>,
    return
  }
  func.func @transform_0(%arg0: i32) -> (i32, i32) {
    %c0_i32 = arith.constant 0 : i32
    %c0_i32_0 = arith.constant 0 : i32
    return %arg0, %c0_i32 : i32, i32
  }
  func.func @transform_1(%arg0: i32) -> (i32, i32) {
    %c0_i32 = arith.constant 0 : i32
    %c0_i32_0 = arith.constant 0 : i32
    %c0_i32_1 = arith.constant 0 : i32
    return %c0_i32, %c0_i32_0 : i32, i32
  }
  func.func @transform_2(%arg0: i32) -> (i32, i32) {
    %c0_i32 = arith.constant 0 : i32
    %c0_i32_0 = arith.constant 0 : i32
    %c0_i32_1 = arith.constant 0 : i32
    return %c0_i32, %c0_i32_0 : i32, i32
  }
  func.func @transform_3(%arg0: i32) -> (i32, i32) {
    %c0_i32 = arith.constant 0 : i32
    %c0_i32_0 = arith.constant 0 : i32
    %c0_i32_1 = arith.constant 0 : i32
    return %c0_i32, %c0_i32_0 : i32, i32
  }
  func.func @transform_4(%arg0: i32) -> (i32, i32) {
    %c0_i32 = arith.constant 0 : i32
    %c0_i32_0 = arith.constant 0 : i32
    %c0_i32_1 = arith.constant 0 : i32
    return %c0_i32, %c0_i32_0 : i32, i32
  }
  func.func @transform_5(%arg0: i32) -> (i32, i32) {
    %c0_i32 = arith.constant 0 : i32
    %c0_i32_0 = arith.constant 0 : i32
    return %arg0, %c0_i32 : i32, i32
  }
}

</mosaic_0001>

<llo_original>
// kernel: conv_block_forward.1
$region0: #{conv_block_forward.1}
  #allocation0 [shape = 'u32[]', space=smem, size = 0x4, offset = 0x4, fixed_abs, tag = 'smem constant byte address 0x4 - core index']
  #allocation1 [shape = 'u32[144,128]{1,0:T(1,128)}', space=vmem, size = 0x12000, scoped, tag = 'internal scratch']
  #allocation2 [shape = 'bf16[36,64]{1,0:T(8,128)(2,1)}', space=vmem, size = 0x2800, scoped, tag = 'scratch operand']
  #allocation3 [shape = 'bf16[36,128]{1,0:T(8,128)(2,1)}', space=vmem, size = 0x2800, scoped, tag = 'scratch operand']
  %s0 = inlined_call_operand.vmem [shape: bf16[32,64], index: 0, kind: input, shape index: {}]
  %s1 = inlined_call_operand.vmem [shape: bf16[64,384], index: 1, kind: input, shape index: {}]
  %s2 = inlined_call_operand.vmem [shape: f32[1,128], index: 2, kind: input, shape index: {}]
  %s3 = inlined_call_operand.vmem [shape: bf16[128,384], index: 3, kind: input, shape index: {}]
  %s4 = inlined_call_operand.vmem [shape: f32[1,128], index: 4, kind: input, shape index: {}]
  %s5 = inlined_call_operand.vmem [shape: bf16[32,128], index: 5, kind: output, shape index: {}]
  %s6 = sld [smem:[#allocation0]]
  $region30: #{conv_block_forward.1} parent=0
    _
  %s8 = ssub.s32 1, %s6
  %s9 = scalar_select 0, %s8, %s6
  // Predicated region
  $region2: #{conv_block_forward.1} parent=0 // pred_check
    _
  $region3: #{conv_block_forward.1} parent=0 // pred_check_branch
    %11 = sbr.rel (0) target = $region5
  $region4: #{conv_block_forward.1} parent=0 // pred_region
    _
  $region5: #{conv_block_forward.1} parent=0 // pred_fallthru
    _
  // Predicated region
  $region6: #{conv_block_forward.1} parent=0 // pred_check
    _
  $region7: #{conv_block_forward.1} parent=0 // pred_check_branch
    %13 = sbr.rel (0) target = $region9
  $region8: #{conv_block_forward.1} parent=0 // pred_region
    _
  $region9: #{conv_block_forward.1} parent=0 // pred_fallthru
    _
  // Predicated region
  $region10: #{conv_block_forward.1} parent=0 // pred_check
    _
  $region11: #{conv_block_forward.1} parent=0 // pred_check_branch
    %15 = sbr.rel (0) target = $region13
  $region12: #{conv_block_forward.1} parent=0 // pred_region
    _
  $region13: #{conv_block_forward.1} parent=0 // pred_fallthru
    _
  // Predicated region
  $region14: #{conv_block_forward.1} parent=0 // pred_check
    _
  $region15: #{conv_block_forward.1} parent=0 // pred_check_branch
    %17 = sbr.rel (0) target = $region17
  $region16: #{conv_block_forward.1} parent=0 // pred_region
    _
  $region17: #{conv_block_forward.1} parent=0 // pred_fallthru
    _
  // Predicated region
  $region18: #{conv_block_forward.1} parent=0 // pred_check
    _
  $region19: #{conv_block_forward.1} parent=0 // pred_check_branch
    %19 = sbr.rel (0) target = $region21
  $region20: #{conv_block_forward.1} parent=0 // pred_region
    _
  $region21: #{conv_block_forward.1} parent=0 // pred_fallthru
    _
  %v21 = vld [vmem:[%s0] sm:$0xf]
  %v22 = vld [vmem:[%s0 + $0x4] sm:$0xf]
  %v23 = vld [vmem:[%s0 + $0x8] sm:$0xf]
  %v24 = vld [vmem:[%s0 + $0xc] sm:$0xf]
  %vm25 = vcmask 519168
  %26 = vst.msk [vmem:[#allocation2] sm:$0xf] %vm25, 0
  %27 = vst.msk [vmem:[#allocation2 + $0x4] sm:$0xf] %vm25, 0
  %28 = vst.msk [vmem:[#allocation2 + $0x8] sm:$0xf] %vm25, 0
  %29 = vst.msk [vmem:[#allocation2 + $0xc] sm:$0xf] %vm25, 0
  %vm30 = vcmask 517120
  %31 = vst.msk [vmem:[#allocation2 + $0x10] sm:$0x3] %vm30, 0
  %vm32 = vsmask.f32 256
  %vm33 = vsmask.f32 4368
  %vm34 = vmor %vm32, %vm33
  %v36 = vshrl.u32 %v21, 16
  %v38 = vrot.slane %v36, 7
  %v39 = vshll.u32 %v21, 16
  %v41 = vor.u32 %v38, %v39
  %v42 = vrot.slane %v38, 4
  %v44 = vshrl.u32 %v22, 16
  %v46 = vrot.slane %v44, 7
  %v47 = vshll.u32 %v22, 16
  %v49 = vor.u32 %v46, %v47
  %v50 = vsel %vm34, %v42, %v49
  %v51 = vrot.slane %v46, 4
  %vm55 = vcmask 519168
  %vm56 = vsmask.f32 7938
  %vm57 = vmand %vm55, %vm56
  %v58 = vld [vmem:[#allocation2] sm:$0xf]
  %v59 = vsel %vm57, %v41, %v58
  %60 = vst [vmem:[#allocation2] sm:$0xf] %v59
  %61 = vst.msk [vmem:[#allocation2 + $0x4] sm:$0xf] %vm25, %v50
  %vm62 = vcmask 516096
  %vm63 = vmand %vm62, %vm32
  %v64 = vld [vmem:[#allocation2 + $0x8] sm:$0x1]
  %v65 = vsel %vm63, %v51, %v64
  %66 = vst [vmem:[#allocation2 + $0x8] sm:$0x1] %v65
  %vm67 = vsmask.f32 1280
  %vm68 = vsmask.f32 5392
  %vm69 = vmor %vm67, %vm68
  %v71 = vshrl.u32 %v23, 16
  %v73 = vrot.slane %v71, 6
  %v74 = vshll.u32 %v23, 16
  %v76 = vrot.slane %v74, 7
  %v77 = vor.u32 %v73, %v76
  %v78 = vrot.slane %v77, 4
  %v80 = vshrl.u32 %v24, 16
  %v82 = vrot.slane %v80, 6
  %v83 = vshll.u32 %v24, 16
  %v85 = vrot.slane %v83, 7
  %v86 = vor.u32 %v82, %v85
  %v87 = vsel %vm69, %v78, %v86
  %v88 = vrot.slane %v86, 4
  %vm92 = vcmask 519169
  %vm93 = vsmask.f32 7942
  %vm94 = vmand %vm92, %vm93
  %v95 = vld [vmem:[#allocation2 + $0x8] sm:$0xe]
  %v96 = vsel %vm94, %v77, %v95
  %97 = vst [vmem:[#allocation2 + $0x8] sm:$0xe] %v96
  %98 = vst.msk [vmem:[#allocation2 + $0xc] sm:$0xf] %vm25, %v87
  %vm99 = vcmask 517120
  %vm100 = vmand %vm99, %vm67
  %v101 = vld [vmem:[#allocation2 + $0x10] sm:$0x3]
  %v102 = vsel %vm100, %v88, %v101
  %103 = vst [vmem:[#allocation2 + $0x10] sm:$0x3] %v102
  %v104 = vld [vmem:[#allocation2] sm:$0xf]
  %v105 = vld [vmem:[#allocation2 + $0x4] sm:$0xf]
  %v106 = vld [vmem:[#allocation2 + $0x8] sm:$0xf]
  %v107 = vld [vmem:[#allocation2 + $0xc] sm:$0xf]
  %v108 = vld [vmem:[#allocation2 + $0x10] sm:$0x3]
  %v109 = vld [vmem:[%s1] sm:$0xff]
  %v110 = vld [vmem:[%s1 + $0x8] sm:$0xf]
  %v111 = vld [vmem:[%s1 + $0xc] sm:$0xff]
  %v112 = vld [vmem:[%s1 + $0x14] sm:$0xf]
  %v113 = vld [vmem:[%s1 + $0x18] sm:$0xff]
  %v114 = vld [vmem:[%s1 + $0x20] sm:$0xf]
  %v115 = vld [vmem:[%s1 + $0x24] sm:$0xff]
  %v116 = vld [vmem:[%s1 + $0x2c] sm:$0xf]
  %v117 = vld [vmem:[%s1 + $0x30] sm:$0xff]
  %v118 = vld [vmem:[%s1 + $0x38] sm:$0xf]
  %v119 = vld [vmem:[%s1 + $0x3c] sm:$0xff]
  %v120 = vld [vmem:[%s1 + $0x44] sm:$0xf]
  %v121 = vld [vmem:[%s1 + $0x48] sm:$0xff]
  %v122 = vld [vmem:[%s1 + $0x50] sm:$0xf]
  %v123 = vld [vmem:[%s1 + $0x54] sm:$0xff]
  %v124 = vld [vmem:[%s1 + $0x5c] sm:$0xf]
  %v130 = vunpack.c.l.b16 %v104
  %v131 = vunpack.c.l.b16 %v105
  %v132 = vunpack.c.l.b16 %v106
  %v133 = vunpack.c.l.b16 %v107
  %v134 = vunpack.c.l.b16 %v108
  %v135 = vpack.c.b16 %v131, %v130
  %v136 = vpack.c.b16 %v133, %v132
  %v137 = vpack.c.b16 %v134, %v134
  %v154 = vunpack.c.l.b16 %v109
  %v155 = vunpack.c.h.b16 %v109
  %v156 = vunpack.c.l.b16 %v110
  %v157 = vunpack.c.l.b16 %v111
  %v158 = vunpack.c.h.b16 %v111
  %v159 = vunpack.c.l.b16 %v112
  %v160 = vunpack.c.l.b16 %v113
  %v161 = vunpack.c.h.b16 %v113
  %v162 = vunpack.c.l.b16 %v114
  %v163 = vunpack.c.l.b16 %v115
  %v164 = vunpack.c.h.b16 %v115
  %v165 = vunpack.c.l.b16 %v116
  %v166 = vunpack.c.l.b16 %v117
  %v167 = vunpack.c.h.b16 %v117
  %v168 = vunpack.c.l.b16 %v118
  %v169 = vunpack.c.l.b16 %v119
  %v170 = vunpack.c.h.b16 %v119
  %v171 = vunpack.c.l.b16 %v120
  %v172 = vunpack.c.l.b16 %v121
  %v173 = vunpack.c.h.b16 %v121
  %v174 = vunpack.c.l.b16 %v122
  %v175 = vunpack.c.l.b16 %v123
  %v176 = vunpack.c.h.b16 %v123
  %v177 = vunpack.c.l.b16 %v124
  %v178 = vpack.c.b16 %v157, %v154
  %v179 = vpack.c.b16 %v158, %v155
  %v180 = vpack.c.b16 %v159, %v156
  %v181 = vpack.c.b16 %v163, %v160
  %v182 = vpack.c.b16 %v164, %v161
  %v183 = vpack.c.b16 %v165, %v162
  %v184 = vpack.c.b16 %v169, %v166
  %v185 = vpack.c.b16 %v170, %v167
  %v186 = vpack.c.b16 %v171, %v168
  %v187 = vpack.c.b16 %v175, %v172
  %v188 = vpack.c.b16 %v176, %v173
  %v189 = vpack.c.b16 %v177, %v174
  %vm202 = vcmask 523264
  %v204 = vsel %vm202, %v135, 0
  %v207 = vsel %vm202, %v136, 0
  %v210 = vsel %vm202, %v137, 0
  %212 = vmatprep.subr.bf16.mxu0 %v179
  %213 = vmatpush1.bf16.msra.mxu0 %v178
  %214 = vmatprep.subr.bf16.mxu0 %v182
  %215 = vmatpush1.bf16.msra.mxu0 %v181
  %216 = vmatprep.subr.bf16.mxu0 %v185
  %217 = vmatpush1.bf16.msra.mxu0 %v184
  %218 = vmatprep.subr.bf16.mxu0 %v188
  %219 = vmatpush1.bf16.msra.mxu0 %v187
  %220 = vmatprep.subr.bf16.mxu0 0
  %221 = vmatpush1.bf16.msra.mxu0 0
  %222 = vmatprep.subr.bf16.mxu0 0
  %223 = vmatpush1.bf16.msra.mxu0 0
  %224 = vmatprep.subr.bf16.mxu0 0
  %225 = vmatpush1.bf16.msra.mxu0 0
  %226 = vmatprep.subr.bf16.mxu0 0
  %227 = vmatpush1.bf16.msra.mxu0 0
  %228 = vmatprep.subr.bf16.mxu0 0
  %229 = vmatpush1.bf16.msra.mxu0 0
  %230 = vmatprep.subr.bf16.mxu0 0
  %231 = vmatpush1.bf16.msra.mxu0 0
  %232 = vmatprep.subr.bf16.mxu0 0
  %233 = vmatpush1.bf16.msra.mxu0 0
  %234 = vmatprep.subr.bf16.mxu0 0
  %235 = vmatpush1.bf16.msra.mxu0 0
  %236 = vmatprep.subr.bf16.mxu0 0
  %237 = vmatpush1.bf16.msra.mxu0 0
  %238 = vmatprep.subr.bf16.mxu0 0
  %239 = vmatpush1.bf16.msra.mxu0 0
  %240 = vmatprep.subr.bf16.mxu0 0
  %241 = vmatpush1.bf16.msra.mxu0 0
  %242 = vmatprep.subr.bf16.mxu0 0
  %243 = vmatpush1.bf16.msra.mxu0 0
  %244 = vmatprep.mubr.bf16.mxu0 0
  %245 = vmatmul.mubr.bf16.gmra.mrb[0].mxu0 %v204
  %v246 = vpop.f32.mrb[0].mxu0
  %v247 = vadd.f32 0.0, %v246
  %v248 = vpop.f32.mrb[0].mxu0
  %v249 = vadd.f32 0.0, %v248
  %v250 = vpop.f32.mrb[0].mxu0
  %v251 = vadd.f32 0.0, %v250
  %v252 = vpop.f32.mrb[0].mxu0
  %v253 = vadd.f32 0.0, %v252
  %254 = vmatprep.mubr.bf16.mxu0 0
  %255 = vmatmul.mubr.bf16.gmra.mrb[0].mxu0 %v207
  %v256 = vpop.f32.mrb[0].mxu0
  %v257 = vadd.f32 0.0, %v256
  %v258 = vpop.f32.mrb[0].mxu0
  %v259 = vadd.f32 0.0, %v258
  %v260 = vpop.f32.mrb[0].mxu0
  %v261 = vadd.f32 0.0, %v260
  %v262 = vpop.f32.mrb[0].mxu0
  %v263 = vadd.f32 0.0, %v262
  %264 = vmatprep.mubr.bf16.mxu0 0
  %265 = vmatmul.mubr.bf16.gmra.mrb[0].mxu0 %v210
  %v266 = vpop.f32.mrb[0].mxu0
  %v267 = vadd.f32 0.0, %v266
  %v268 = vpop.f32.mrb[0].mxu0
  %v269 = vadd.f32 0.0, %v268
  %v270 = vpop.f32.mrb[0].mxu0
  %v271 = vpop.f32.mrb[0].mxu0
  %272 = vdwg.mxu0
  %273 = vmatprep.subr.bf16.mxu0 0
  %274 = vmatpush1.bf16.msra.mxu0 %v180
  %275 = vmatprep.subr.bf16.mxu0 0
  %276 = vmatpush1.bf16.msra.mxu0 %v183
  %277 = vmatprep.subr.bf16.mxu0 0
  %278 = vmatpush1.bf16.msra.mxu0 %v186
  %279 = vmatprep.subr.bf16.mxu0 0
  %280 = vmatpush1.bf16.msra.mxu0 %v189
  %281 = vmatprep.subr.bf16.mxu0 0
  %282 = vmatpush1.bf16.msra.mxu0 0
  %283 = vmatprep.subr.bf16.mxu0 0
  %284 = vmatpush1.bf16.msra.mxu0 0
  %285 = vmatprep.subr.bf16.mxu0 0
  %286 = vmatpush1.bf16.msra.mxu0 0
  %287 = vmatprep.subr.bf16.mxu0 0
  %288 = vmatpush1.bf16.msra.mxu0 0
  %289 = vmatprep.subr.bf16.mxu0 0
  %290 = vmatpush1.bf16.msra.mxu0 0
  %291 = vmatprep.subr.bf16.mxu0 0
  %292 = vmatpush1.bf16.msra.mxu0 0
  %293 = vmatprep.subr.bf16.mxu0 0
  %294 = vmatpush1.bf16.msra.mxu0 0
  %295 = vmatprep.subr.bf16.mxu0 0
  %296 = vmatpush1.bf16.msra.mxu0 0
  %297 = vmatprep.subr.bf16.mxu0 0
  %298 = vmatpush1.bf16.msra.mxu0 0
  %299 = vmatprep.subr.bf16.mxu0 0
  %300 = vmatpush1.bf16.msra.mxu0 0
  %301 = vmatprep.subr.bf16.mxu0 0
  %302 = vmatpush1.bf16.msra.mxu0 0
  %303 = vmatprep.subr.bf16.mxu0 0
  %304 = vmatpush1.bf16.msra.mxu0 0
  %305 = vmatprep.mubr.bf16.mxu0 0
  %306 = vmatmul.mubr.bf16.gmra.mrb[0].mxu0 %v204
  %v307 = vpop.f32.mrb[0].mxu0
  %v308 = vadd.f32 0.0, %v307
  %v309 = vpop.f32.mrb[0].mxu0
  %v310 = vpop.f32.mrb[0].mxu0
  %v311 = vadd.f32 0.0, %v310
  %v312 = vpop.f32.mrb[0].mxu0
  %313 = vmatprep.mubr.bf16.mxu0 0
  %314 = vmatmul.mubr.bf16.gmra.mrb[0].mxu0 %v207
  %v315 = vpop.f32.mrb[0].mxu0
  %v316 = vadd.f32 0.0, %v315
  %v317 = vpop.f32.mrb[0].mxu0
  %v318 = vpop.f32.mrb[0].mxu0
  %v319 = vadd.f32 0.0, %v318
  %v320 = vpop.f32.mrb[0].mxu0
  %321 = vmatprep.mubr.bf16.mxu0 0
  %322 = vmatmul.mubr.bf16.gmra.mrb[0].mxu0 %v210
  %v323 = vpop.f32.mrb[0].mxu0
  %v324 = vadd.f32 0.0, %v323
  %v325 = vpop.f32.mrb[0].mxu0
  %v326 = vpop.f32.mrb[0].mxu0
  %v327 = vpop.f32.mrb[0].mxu0
  %328 = vdwg.mxu0
  %vm334 = vcmask 1046528
  %v335 = vrot.slane %v249, 1
  %v336 = vrot.slane %v253, 1
  %v337 = vsel %vm334, %v335, %v336
  %v338 = vrot.slane %v259, 1
  %v339 = vsel %vm334, %v336, %v338
  %v340 = vrot.slane %v263, 1
  %v341 = vsel %vm334, %v338, %v340
  %v342 = vrot.slane %v269, 1
  %v343 = vsel %vm334, %v340, %v342
  %v349 = vadd.f32 %v247, %v337
  %v350 = vadd.f32 %v251, %v339
  %v351 = vadd.f32 %v257, %v341
  %v352 = vadd.f32 %v261, %v343
  %v353 = vadd.f32 %v267, %v342
  %vm359 = vcmask 1045504
  %v360 = vrot.slane %v308, 2
  %v361 = vrot.slane %v311, 2
  %v362 = vsel %vm359, %v360, %v361
  %v363 = vrot.slane %v316, 2
  %v364 = vsel %vm359, %v361, %v363
  %v365 = vrot.slane %v319, 2
  %v366 = vsel %vm359, %v363, %v365
  %v367 = vrot.slane %v324, 2
  %v368 = vsel %vm359, %v365, %v367
  %v374 = vadd.f32 %v349, %v362
  %v375 = vadd.f32 %v350, %v364
  %v376 = vadd.f32 %v351, %v366
  %v377 = vadd.f32 %v352, %v368
  %v378 = vadd.f32 %v353, %v367
  %v379 = vld [vmem:[%s2] sm:$0x1]
  %v381 = vlaneseq
  %v382 = vshrl.u32 %v381, 7
  %v383 = vsub.s32 0, %v382
  %v384 = vrot.slane %v379, %v383
  %v386 = vadd.f32 %v374, %v384
  %v387 = vadd.f32 %v375, %v384
  %v388 = vadd.f32 %v376, %v384
  %v389 = vadd.f32 %v377, %v384
  %v390 = vadd.f32 %v378, %v384
  %vm391 = vcmp.ge.f32.partialorder %v386, 0.0
  %vm392 = vcmp.ge.f32.partialorder %v387, 0.0
  %vm393 = vcmp.ge.f32.partialorder %v388, 0.0
  %vm394 = vcmp.ge.f32.partialorder %v389, 0.0
  %vm395 = vcmp.ge.f32.partialorder %v390, 0.0
  %v396 = vmul.f32 %v386, 0.01
  %v397 = vmul.f32 %v387, 0.01
  %v398 = vmul.f32 %v388, 0.01
  %v399 = vmul.f32 %v389, 0.01
  %v400 = vmul.f32 %v390, 0.01
  %v401 = vsel %vm391, %v386, %v396
  %v402 = vsel %vm392, %v387, %v397
  %v403 = vsel %vm393, %v388, %v398
  %v404 = vsel %vm394, %v389, %v399
  %v405 = vsel %vm395, %v390, %v400
  %406 = vst [vmem:[#allocation3] sm:$0xf] 0
  %407 = vst [vmem:[#allocation3 + $0x4] sm:$0xf] 0
  %408 = vst [vmem:[#allocation3 + $0x8] sm:$0xf] 0
  %409 = vst [vmem:[#allocation3 + $0xc] sm:$0xf] 0
  %410 = vst [vmem:[#allocation3 + $0x10] sm:$0x3] 0
  %v411 = vpack.c.bf16 %v402, %v401
  %v413 = vunpack.c.l.b16 %v411
  %v414 = vunpack.c.h.b16 %v411
  %v415 = vpack.c.b16 %v413, %v413
  %v416 = vpack.c.b16 %v414, %v414
  %v418 = vshrl.u32 %v415, 16
  %v420 = vrot.slane %v418, 7
  %v421 = vshll.u32 %v415, 16
  %v423 = vor.u32 %v420, %v421
  %v424 = vrot.slane %v420, 4
  %v426 = vshrl.u32 %v416, 16
  %v428 = vrot.slane %v426, 7
  %v429 = vshll.u32 %v416, 16
  %v431 = vor.u32 %v428, %v429
  %v432 = vsel %vm34, %v424, %v431
  %v433 = vrot.slane %v428, 4
  %vm437 = vcmask 1043456
  %vm438 = vmand %vm437, %vm56
  %v439 = vld [vmem:[#allocation3] sm:$0xf]
  %v440 = vsel %vm438, %v423, %v439
  %441 = vst [vmem:[#allocation3] sm:$0xf] %v440
  %442 = vst [vmem:[#allocation3 + $0x4] sm:$0xf] %v432
  %vm443 = vcmask 1040384
  %vm444 = vmand %vm443, %vm32
  %v445 = vld [vmem:[#allocation3 + $0x8] sm:$0x1]
  %v446 = vsel %vm444, %v433, %v445
  %447 = vst [vmem:[#allocation3 + $0x8] sm:$0x1] %v446
  %v448 = vpack.c.bf16 %v404, %v403
  %v449 = vpack.c.bf16 %v405, %v405
  %v452 = vunpack.c.l.b16 %v448
  %v453 = vunpack.c.h.b16 %v448
  %v454 = vunpack.c.l.b16 %v449
  %v455 = vpack.c.b16 %v452, %v452
  %v456 = vpack.c.b16 %v453, %v453
  %v457 = vpack.c.b16 %v454, %v454
  %v459 = vshrl.u32 %v455, 16
  %v461 = vrot.slane %v459, 7
  %v462 = vshll.u32 %v455, 16
  %v464 = vor.u32 %v461, %v462
  %v465 = vrot.slane %v461, 4
  %v467 = vshrl.u32 %v456, 16
  %v469 = vrot.slane %v467, 7
  %v470 = vshll.u32 %v456, 16
  %v472 = vor.u32 %v469, %v470
  %v473 = vsel %vm34, %v465, %v472
  %v474 = vrot.slane %v469, 4
  %v476 = vshrl.u32 %v457, 16
  %v478 = vrot.slane %v476, 7
  %v479 = vshll.u32 %v457, 16
  %v481 = vor.u32 %v478, %v479
  %v482 = vsel %vm34, %v474, %v481
  %vm486 = vcmask 1043457
  %vm487 = vmand %vm486, %vm93
  %v488 = vld [vmem:[#allocation3 + $0x8] sm:$0xe]
  %v489 = vsel %vm487, %v464, %v488
  %490 = vst [vmem:[#allocation3 + $0x8] sm:$0xe] %v489
  %491 = vst [vmem:[#allocation3 + $0xc] sm:$0xf] %v473
  %vm492 = vcmask 1041408
  %vm493 = vmand %vm492, %vm67
  %v494 = vld [vmem:[#allocation3 + $0x10] sm:$0x3]
  %v495 = vsel %vm493, %v482, %v494
  %496 = vst [vmem:[#allocation3 + $0x10] sm:$0x3] %v495
  %v497 = vld [vmem:[#allocation3] sm:$0xf]
  %v498 = vld [vmem:[#allocation3 + $0x4] sm:$0xf]
  %v499 = vld [vmem:[#allocation3 + $0x8] sm:$0xf]
  %v500 = vld [vmem:[#allocation3 + $0xc] sm:$0xf]
  %v501 = vld [vmem:[#allocation3 + $0x10] sm:$0x3]
  %v502 = vld [vmem:[%s3] sm:$0xff]
  %v503 = vld [vmem:[%s3 + $0x8] sm:$0xf]
  %v504 = vld [vmem:[%s3 + $0xc] sm:$0xff]
  %v505 = vld [vmem:[%s3 + $0x14] sm:$0xf]
  %v506 = vld [vmem:[%s3 + $0x18] sm:$0xff]
  %v507 = vld [vmem:[%s3 + $0x20] sm:$0xf]
  %v508 = vld [vmem:[%s3 + $0x24] sm:$0xff]
  %v509 = vld [vmem:[%s3 + $0x2c] sm:$0xf]
  %v510 = vld [vmem:[%s3 + $0x30] sm:$0xff]
  %v511 = vld [vmem:[%s3 + $0x38] sm:$0xf]
  %v512 = vld [vmem:[%s3 + $0x3c] sm:$0xff]
  %v513 = vld [vmem:[%s3 + $0x44] sm:$0xf]
  %v514 = vld [vmem:[%s3 + $0x48] sm:$0xff]
  %v515 = vld [vmem:[%s3 + $0x50] sm:$0xf]
  %v516 = vld [vmem:[%s3 + $0x54] sm:$0xff]
  %v517 = vld [vmem:[%s3 + $0x5c] sm:$0xf]
  %v518 = vld [vmem:[%s3 + $0x60] sm:$0xff]
  %v519 = vld [vmem:[%s3 + $0x68] sm:$0xf]
  %v520 = vld [vmem:[%s3 + $0x6c] sm:$0xff]
  %v521 = vld [vmem:[%s3 + $0x74] sm:$0xf]
  %v522 = vld [vmem:[%s3 + $0x78] sm:$0xff]
  %v523 = vld [vmem:[%s3 + $0x80] sm:$0xf]
  %v524 = vld [vmem:[%s3 + $0x84] sm:$0xff]
  %v525 = vld [vmem:[%s3 + $0x8c] sm:$0xf]
  %v526 = vld [vmem:[%s3 + $0x90] sm:$0xff]
  %v527 = vld [vmem:[%s3 + $0x98] sm:$0xf]
  %v528 = vld [vmem:[%s3 + $0x9c] sm:$0xff]
  %v529 = vld [vmem:[%s3 + $0xa4] sm:$0xf]
  %v530 = vld [vmem:[%s3 + $0xa8] sm:$0xff]
  %v531 = vld [vmem:[%s3 + $0xb0] sm:$0xf]
  %v532 = vld [vmem:[%s3 + $0xb4] sm:$0xff]
  %v533 = vld [vmem:[%s3 + $0xbc] sm:$0xf]
  %v539 = vunpack.c.l.b16 %v497
  %v540 = vunpack.c.l.b16 %v498
  %v541 = vunpack.c.l.b16 %v499
  %v542 = vunpack.c.l.b16 %v500
  %v543 = vunpack.c.l.b16 %v501
  %v544 = vpack.c.b16 %v540, %v539
  %v545 = vpack.c.b16 %v542, %v541
  %v546 = vpack.c.b16 %v543, %v543
  %v582 = vunpack.c.l.b16 %v502
  %v583 = vunpack.c.h.b16 %v502
  %v584 = vunpack.c.l.b16 %v503
  %v585 = vunpack.c.l.b16 %v504
  %v586 = vunpack.c.h.b16 %v504
  %v587 = vunpack.c.l.b16 %v505
  %v588 = vunpack.c.l.b16 %v506
  %v589 = vunpack.c.h.b16 %v506
  %v590 = vunpack.c.l.b16 %v507
  %v591 = vunpack.c.l.b16 %v508
  %v592 = vunpack.c.h.b16 %v508
  %v593 = vunpack.c.l.b16 %v509
  %v594 = vunpack.c.l.b16 %v510
  %v595 = vunpack.c.h.b16 %v510
  %v596 = vunpack.c.l.b16 %v511
  %v597 = vunpack.c.l.b16 %v512
  %v598 = vunpack.c.h.b16 %v512
  %v599 = vunpack.c.l.b16 %v513
  %v600 = vunpack.c.l.b16 %v514
  %v601 = vunpack.c.h.b16 %v514
  %v602 = vunpack.c.l.b16 %v515
  %v603 = vunpack.c.l.b16 %v516
  %v604 = vunpack.c.h.b16 %v516
  %v605 = vunpack.c.l.b16 %v517
  %v606 = vunpack.c.l.b16 %v518
  %v607 = vunpack.c.h.b16 %v518
  %v608 = vunpack.c.l.b16 %v519
  %v609 = vunpack.c.l.b16 %v520
  %v610 = vunpack.c.h.b16 %v520
  %v611 = vunpack.c.l.b16 %v521
  %v612 = vunpack.c.l.b16 %v522
  %v613 = vunpack.c.h.b16 %v522
  %v614 = vunpack.c.l.b16 %v523
  %v615 = vunpack.c.l.b16 %v524
  %v616 = vunpack.c.h.b16 %v524
  %v617 = vunpack.c.l.b16 %v525
  %v618 = vunpack.c.l.b16 %v526
  %v619 = vunpack.c.h.b16 %v526
  %v620 = vunpack.c.l.b16 %v527
  %v621 = vunpack.c.l.b16 %v528
  %v622 = vunpack.c.h.b16 %v528
  %v623 = vunpack.c.l.b16 %v529
  %v624 = vunpack.c.l.b16 %v530
  %v625 = vunpack.c.h.b16 %v530
  %v626 = vunpack.c.l.b16 %v531
  %v627 = vunpack.c.l.b16 %v532
  %v628 = vunpack.c.h.b16 %v532
  %v629 = vunpack.c.l.b16 %v533
  %v630 = vpack.c.b16 %v585, %v582
  %v631 = vpack.c.b16 %v586, %v583
  %v632 = vpack.c.b16 %v587, %v584
  %v633 = vpack.c.b16 %v591, %v588
  %v634 = vpack.c.b16 %v592, %v589
  %v635 = vpack.c.b16 %v593, %v590
  %v636 = vpack.c.b16 %v597, %v594
  %v637 = vpack.c.b16 %v598, %v595
  %v638 = vpack.c.b16 %v599, %v596
  %v639 = vpack.c.b16 %v603, %v600
  %v640 = vpack.c.b16 %v604, %v601
  %v641 = vpack.c.b16 %v605, %v602
  %v642 = vpack.c.b16 %v609, %v606
  %v643 = vpack.c.b16 %v610, %v607
  %v644 = vpack.c.b16 %v611, %v608
  %v645 = vpack.c.b16 %v615, %v612
  %v646 = vpack.c.b16 %v616, %v613
  %v647 = vpack.c.b16 %v617, %v614
  %v648 = vpack.c.b16 %v621, %v618
  %v649 = vpack.c.b16 %v622, %v619
  %v650 = vpack.c.b16 %v623, %v620
  %v651 = vpack.c.b16 %v627, %v624
  %v652 = vpack.c.b16 %v628, %v625
  %v653 = vpack.c.b16 %v629, %v626
  %678 = vmatprep.subr.bf16.mxu0 %v631
  %679 = vmatpush1.bf16.msra.mxu0 %v630
  %680 = vmatprep.subr.bf16.mxu0 %v634
  %681 = vmatpush1.bf16.msra.mxu0 %v633
  %682 = vmatprep.subr.bf16.mxu0 %v637
  %683 = vmatpush1.bf16.msra.mxu0 %v636
  %684 = vmatprep.subr.bf16.mxu0 %v640
  %685 = vmatpush1.bf16.msra.mxu0 %v639
  %686 = vmatprep.subr.bf16.mxu0 %v643
  %687 = vmatpush1.bf16.msra.mxu0 %v642
  %688 = vmatprep.subr.bf16.mxu0 %v646
  %689 = vmatpush1.bf16.msra.mxu0 %v645
  %690 = vmatprep.subr.bf16.mxu0 %v649
  %691 = vmatpush1.bf16.msra.mxu0 %v648
  %692 = vmatprep.subr.bf16.mxu0 %v652
  %693 = vmatpush1.bf16.msra.mxu0 %v651
  %694 = vmatprep.subr.bf16.mxu0 0
  %695 = vmatpush1.bf16.msra.mxu0 0
  %696 = vmatprep.subr.bf16.mxu0 0
  %697 = vmatpush1.bf16.msra.mxu0 0
  %698 = vmatprep.subr.bf16.mxu0 0
  %699 = vmatpush1.bf16.msra.mxu0 0
  %700 = vmatprep.subr.bf16.mxu0 0
  %701 = vmatpush1.bf16.msra.mxu0 0
  %702 = vmatprep.subr.bf16.mxu0 0
  %703 = vmatpush1.bf16.msra.mxu0 0
  %704 = vmatprep.subr.bf16.mxu0 0
  %705 = vmatpush1.bf16.msra.mxu0 0
  %706 = vmatprep.subr.bf16.mxu0 0
  %707 = vmatpush1.bf16.msra.mxu0 0
  %708 = vmatprep.subr.bf16.mxu0 0
  %709 = vmatpush1.bf16.msra.mxu0 0
  %710 = vmatprep.mubr.bf16.mxu0 0
  %711 = vmatmul.mubr.bf16.gmra.mrb[0].mxu0 %v544
  %v712 = vpop.f32.mrb[0].mxu0
  %v713 = vadd.f32 0.0, %v712
  %v714 = vpop.f32.mrb[0].mxu0
  %v715 = vadd.f32 0.0, %v714
  %v716 = vpop.f32.mrb[0].mxu0
  %v717 = vadd.f32 0.0, %v716
  %v718 = vpop.f32.mrb[0].mxu0
  %v719 = vadd.f32 0.0, %v718
  %720 = vmatprep.mubr.bf16.mxu0 0
  %721 = vmatmul.mubr.bf16.gmra.mrb[0].mxu0 %v545
  %v722 = vpop.f32.mrb[0].mxu0
  %v723 = vadd.f32 0.0, %v722
  %v724 = vpop.f32.mrb[0].mxu0
  %v725 = vadd.f32 0.0, %v724
  %v726 = vpop.f32.mrb[0].mxu0
  %v727 = vadd.f32 0.0, %v726
  %v728 = vpop.f32.mrb[0].mxu0
  %v729 = vadd.f32 0.0, %v728
  %730 = vmatprep.mubr.bf16.mxu0 0
  %731 = vmatmul.mubr.bf16.gmra.mrb[0].mxu0 %v546
  %v732 = vpop.f32.mrb[0].mxu0
  %v733 = vadd.f32 0.0, %v732
  %v734 = vpop.f32.mrb[0].mxu0
  %v735 = vadd.f32 0.0, %v734
  %v736 = vpop.f32.mrb[0].mxu0
  %v737 = vpop.f32.mrb[0].mxu0
  %738 = vdwg.mxu0
  %739 = vmatprep.subr.bf16.mxu0 0
  %740 = vmatpush1.bf16.msra.mxu0 %v632
  %741 = vmatprep.subr.bf16.mxu0 0
  %742 = vmatpush1.bf16.msra.mxu0 %v635
  %743 = vmatprep.subr.bf16.mxu0 0
  %744 = vmatpush1.bf16.msra.mxu0 %v638
  %745 = vmatprep.subr.bf16.mxu0 0
  %746 = vmatpush1.bf16.msra.mxu0 %v641
  %747 = vmatprep.subr.bf16.mxu0 0
  %748 = vmatpush1.bf16.msra.mxu0 %v644
  %749 = vmatprep.subr.bf16.mxu0 0
  %750 = vmatpush1.bf16.msra.mxu0 %v647
  %751 = vmatprep.subr.bf16.mxu0 0
  %752 = vmatpush1.bf16.msra.mxu0 %v650
  %753 = vmatprep.subr.bf16.mxu0 0
  %754 = vmatpush1.bf16.msra.mxu0 %v653
  %755 = vmatprep.subr.bf16.mxu0 0
  %756 = vmatpush1.bf16.msra.mxu0 0
  %757 = vmatprep.subr.bf16.mxu0 0
  %758 = vmatpush1.bf16.msra.mxu0 0
  %759 = vmatprep.subr.bf16.mxu0 0
  %760 = vmatpush1.bf16.msra.mxu0 0
  %761 = vmatprep.subr.bf16.mxu0 0
  %762 = vmatpush1.bf16.msra.mxu0 0
  %763 = vmatprep.subr.bf16.mxu0 0
  %764 = vmatpush1.bf16.msra.mxu0 0
  %765 = vmatprep.subr.bf16.mxu0 0
  %766 = vmatpush1.bf16.msra.mxu0 0
  %767 = vmatprep.subr.bf16.mxu0 0
  %768 = vmatpush1.bf16.msra.mxu0 0
  %769 = vmatprep.subr.bf16.mxu0 0
  %770 = vmatpush1.bf16.msra.mxu0 0
  %771 = vmatprep.mubr.bf16.mxu0 0
  %772 = vmatmul.mubr.bf16.gmra.mrb[0].mxu0 %v544
  %v773 = vpop.f32.mrb[0].mxu0
  %v774 = vadd.f32 0.0, %v773
  %v775 = vpop.f32.mrb[0].mxu0
  %v776 = vpop.f32.mrb[0].mxu0
  %v777 = vadd.f32 0.0, %v776
  %v778 = vpop.f32.mrb[0].mxu0
  %779 = vmatprep.mubr.bf16.mxu0 0
  %780 = vmatmul.mubr.bf16.gmra.mrb[0].mxu0 %v545
  %v781 = vpop.f32.mrb[0].mxu0
  %v782 = vadd.f32 0.0, %v781
  %v783 = vpop.f32.mrb[0].mxu0
  %v784 = vpop.f32.mrb[0].mxu0
  %v785 = vadd.f32 0.0, %v784
  %v786 = vpop.f32.mrb[0].mxu0
  %787 = vmatprep.mubr.bf16.mxu0 0
  %788 = vmatmul.mubr.bf16.gmra.mrb[0].mxu0 %v546
  %v789 = vpop.f32.mrb[0].mxu0
  %v790 = vadd.f32 0.0, %v789
  %v791 = vpop.f32.mrb[0].mxu0
  %v792 = vpop.f32.mrb[0].mxu0
  %v793 = vpop.f32.mrb[0].mxu0
  %794 = vdwg.mxu0
  %v800 = vrot.slane %v715, 1
  %v801 = vrot.slane %v719, 1
  %v802 = vsel %vm334, %v800, %v801
  %v803 = vrot.slane %v725, 1
  %v804 = vsel %vm334, %v801, %v803
  %v805 = vrot.slane %v729, 1
  %v806 = vsel %vm334, %v803, %v805
  %v807 = vrot.slane %v735, 1
  %v808 = vsel %vm334, %v805, %v807
  %v814 = vadd.f32 %v713, %v802
  %v815 = vadd.f32 %v717, %v804
  %v816 = vadd.f32 %v723, %v806
  %v817 = vadd.f32 %v727, %v808
  %v818 = vadd.f32 %v733, %v807
  %v824 = vrot.slane %v774, 2
  %v825 = vrot.slane %v777, 2
  %v826 = vsel %vm359, %v824, %v825
  %v827 = vrot.slane %v782, 2
  %v828 = vsel %vm359, %v825, %v827
  %v829 = vrot.slane %v785, 2
  %v830 = vsel %vm359, %v827, %v829
  %v831 = vrot.slane %v790, 2
  %v832 = vsel %vm359, %v829, %v831
  %v838 = vadd.f32 %v814, %v826
  %v839 = vadd.f32 %v815, %v828
  %v840 = vadd.f32 %v816, %v830
  %v841 = vadd.f32 %v817, %v832
  %v842 = vadd.f32 %v818, %v831
  %v843 = vld [vmem:[%s4] sm:$0x1]
  %v845 = vlaneseq
  %v846 = vshrl.u32 %v845, 7
  %v847 = vsub.s32 0, %v846
  %v848 = vrot.slane %v843, %v847
  %v850 = vadd.f32 %v838, %v848
  %v851 = vadd.f32 %v839, %v848
  %v852 = vadd.f32 %v840, %v848
  %v853 = vadd.f32 %v841, %v848
  %v854 = vadd.f32 %v842, %v848
  %vm855 = vcmp.ge.f32.partialorder %v850, 0.0
  %vm856 = vcmp.ge.f32.partialorder %v851, 0.0
  %vm857 = vcmp.ge.f32.partialorder %v852, 0.0
  %vm858 = vcmp.ge.f32.partialorder %v853, 0.0
  %vm859 = vcmp.ge.f32.partialorder %v854, 0.0
  %v860 = vmul.f32 %v850, 0.01
  %v861 = vmul.f32 %v851, 0.01
  %v862 = vmul.f32 %v852, 0.01
  %v863 = vmul.f32 %v853, 0.01
  %v864 = vmul.f32 %v854, 0.01
  %v865 = vsel %vm855, %v850, %v860
  %v866 = vsel %vm856, %v851, %v861
  %v867 = vsel %vm857, %v852, %v862
  %v868 = vsel %vm858, %v853, %v863
  %v869 = vsel %vm859, %v854, %v864
  %v870 = vpack.c.bf16 %v866, %v865
  %v872 = vunpack.c.l.b16 %v870
  %v873 = vunpack.c.h.b16 %v870
  %v874 = vpack.c.b16 %v872, %v872
  %v875 = vpack.c.b16 %v873, %v873
  %878 = vst [vmem:[%s5] sm:$0xf] %v874
  %879 = vst [vmem:[%s5 + $0x4] sm:$0xf] %v875
  %v880 = vpack.c.bf16 %v868, %v867
  %v881 = vpack.c.bf16 %v869, %v869
  %v884 = vunpack.c.l.b16 %v880
  %v885 = vunpack.c.h.b16 %v880
  %v886 = vunpack.c.l.b16 %v881
  %v887 = vpack.c.b16 %v884, %v884
  %v888 = vpack.c.b16 %v885, %v885
  %v889 = vpack.c.b16 %v886, %v886
  %vm890 = vcmask 1042432
  %vm891 = vcmask 1046532
  %vm892 = vmor %vm890, %vm891
  %v893 = vrot.slane %v887, 5
  %v894 = vrot.slane %v893, 4
  %v895 = vrot.slane %v888, 5
  %v896 = vsel %vm892, %v894, %v895
  %v897 = vrot.slane %v895, 4
  %v898 = vrot.slane %v889, 5
  %v899 = vsel %vm892, %v897, %v898
  %902 = vst [vmem:[%s5 + $0x8] sm:$0xf] %v896
  %903 = vst [vmem:[%s5 + $0xc] sm:$0xf] %v899
  // Predicated region
  $region22: #{conv_block_forward.1} parent=0 // pred_check
    _
  $region23: #{conv_block_forward.1} parent=0 // pred_check_branch
    %905 = sbr.rel (0) target = $region25
  $region24: #{conv_block_forward.1} parent=0 // pred_region
    _
  $region25: #{conv_block_forward.1} parent=0 // pred_fallthru
    _
  // Predicated region
  $region26: #{conv_block_forward.1} parent=0 // pred_check
    _
  $region27: #{conv_block_forward.1} parent=0 // pred_check_branch
    %907 = sbr.rel (0) target = $region29
  $region28: #{conv_block_forward.1} parent=0 // pred_region
    _
  $region29: #{conv_block_forward.1} parent=0 // pred_fallthru
    _

</llo_original>
